<compile_context>
chip_gen: v6e
topology: v6e:2x2x1
jax: 0.10.0
libtpu: 0.0.40
codegen_flags: <defaults>
</compile_context>

<pallas_src>
import jax
import jax.numpy as jnp
from jax.experimental import pallas as pl
from jax.experimental.pallas import tpu as pltpu


LANE = 128   # lane width / MXU tile target (v5e native; fine for v6e/v7x at this scale)
SUB = 8      # sublane count


def gnn_kernel(a_ref, x_ref, w_ref, b_ref, p_ref, bfc_ref, out_ref):
    a = a_ref[...]                                            # [NP, NP] bf16
    b = b_ref[...]                                            # [2, CP]  f32

    # ---- layer 1: relu((A_hat @ X) @ W1 + b1) ----
    ax = jnp.dot(a, x_ref[...], preferred_element_type=jnp.float32)        # [NP, CP]
    h1 = jnp.dot(ax.astype(jnp.bfloat16), w_ref[0],
                 preferred_element_type=jnp.float32) + b[0:1, :]
    h1 = jnp.maximum(h1, 0.0)
    # dropout(p=0.5, training=False) -> identity in eval mode

    # ---- layer 2: relu(A_hat @ (H1 @ W2) + b2) ----
    hw = jnp.dot(h1.astype(jnp.bfloat16), w_ref[1],
                 preferred_element_type=jnp.float32)                       # [NP, CP]
    h2 = jnp.dot(a, hw.astype(jnp.bfloat16),
                 preferred_element_type=jnp.float32) + b[1:2, :]
    h2 = jnp.maximum(h2, 0.0)

    # ---- global_mean_pool then fc (pool first: GP=8 rows << NP=128 rows) ----
    pooled = jnp.dot(p_ref[...], h2.astype(jnp.bfloat16),
                     preferred_element_type=jnp.float32)                   # [GP, CP]
    # Wfc is padded to 128 output lanes -> lane-dense (GP, 128) store.
    out_ref[...] = (jnp.dot(pooled.astype(jnp.bfloat16), w_ref[2],
                            preferred_element_type=jnp.float32)
                    + bfc_ref[0, 0])


def gnn_forward(a_hat, x, w1, b1, w2, b2, pool_mat, wfc, bfc):
    n, _ = x.shape
    g = pool_mat.shape[0]

    np_ = pl.cdiv(max(n, LANE), LANE) * LANE     # nodes padded to 128 multiple
    cp = LANE                                    # every channel dim padded to 128
    gp = pl.cdiv(max(g, SUB), SUB) * SUB         # graphs padded to 8 sublanes

    def pad2(m, rows, cols):
        return jnp.pad(m, ((0, rows - m.shape[0]), (0, cols - m.shape[1])))

    # bf16 MXU operands, f32 accumulation inside the kernel.
    a_p = pad2(a_hat, np_, np_).astype(jnp.bfloat16)
    x_p = pad2(x, np_, cp).astype(jnp.bfloat16)
    p_p = pad2(pool_mat, gp, np_).astype(jnp.bfloat16)
    # All three weight matrices packed into one (3, CP, CP) bf16 operand
    # (single DMA instead of three).
    w_p = jnp.stack([pad2(w1, cp, cp),
                     pad2(w2, cp, cp),
                     pad2(wfc, cp, cp)], axis=0).astype(jnp.bfloat16)
    b_p = jnp.stack([pad2(b1, 1, cp)[0], pad2(b2, 1, cp)[0]], axis=0)      # (2, CP) f32
    bfc_s = jnp.reshape(bfc, (1, 1)).astype(jnp.float32)                   # SMEM scalar

    vmem = pl.BlockSpec(memory_space=pltpu.MemorySpace.VMEM)
    smem = pl.BlockSpec(memory_space=pltpu.MemorySpace.SMEM)

    flops = 2 * (np_ * np_ * cp          # A @ X
                 + np_ * cp * cp         # (A X) @ W1
                 + np_ * cp * cp         # H1 @ W2
                 + np_ * np_ * cp        # A @ (H1 W2)
                 + gp * np_ * cp         # P @ H2
                 + gp * cp * cp)         # pooled @ Wfc
    bytes_accessed = (2 * (np_ * np_ + np_ * cp + 3 * cp * cp + gp * np_)
                      + 4 * (2 * cp + 1 + gp * cp))

    out = pl.pallas_call(
        gnn_kernel,
        out_shape=jax.ShapeDtypeStruct((gp, LANE), jnp.float32),
        in_specs=[vmem, vmem, vmem, vmem, vmem, smem],
        out_specs=vmem,
        cost_estimate=pl.CostEstimate(flops=flops, transcendentals=0,
                                      bytes_accessed=bytes_accessed),
    )(a_p, x_p, w_p, b_p, p_p, bfc_s)

    return out[:g, :1]


# ----------------------- plain-JAX glue (graph preprocessing) -----------------------

def build_normalized_adjacency(edge_index, num_nodes):
    """Dense A_hat = D^{-1/2} (A + I) D^{-1/2}, matching PyG GCNConv gcn_norm."""
    src, dst = edge_index[0], edge_index[1]
    a = jnp.zeros((num_nodes, num_nodes), jnp.float32)
    # message from src aggregated at dst  ->  A[dst, src] = 1
    a = a.at[dst, src].add(1.0)
    a = jnp.minimum(a, 1.0)                            # dedupe multi-edges
    a = a + jnp.eye(num_nodes, dtype=jnp.float32)      # add self loops
    deg = jnp.sum(a, axis=1)                           # degree (incl. self loop)
    dinv = jnp.where(deg > 0, 1.0 / jnp.sqrt(deg), 0.0)
    return dinv[:, None] * a * dinv[None, :]


def build_pool_matrix(batch, num_graphs):
    """P[g, n] = 1/count_g if batch[n] == g else 0 (global_mean_pool)."""
    onehot = (batch[None, :] == jnp.arange(num_graphs)[:, None]).astype(jnp.float32)
    counts = jnp.maximum(jnp.sum(onehot, axis=1, keepdims=True), 1.0)
    return onehot / counts


def glorot(key, shape):
    fan_in, fan_out = shape[0], shape[1]
    limit = jnp.sqrt(6.0 / (fan_in + fan_out))
    return jax.random.uniform(key, shape, jnp.float32, -limit, limit)


if __name__ == "__main__":
    # small, deterministic problem
    N = 64            # nodes total (2 graphs of 32 nodes each)
    IN_C = 16
    HID_C = 32
    OUT_C = 16
    G = 2             # number of graphs in the batch

    key = jax.random.PRNGKey(0)
    kx, k1, k2, k3, k4 = jax.random.split(key, 5)

    # node features
    x = jax.random.normal(kx, (N, IN_C), jnp.float32)

    # deterministic ring graph inside each of the two graphs (symmetric edges)
    nodes_per_graph = N // G
    srcs, dsts = [], []
    for gi in range(G):
        base = gi * nodes_per_graph
        for i in range(nodes_per_graph):
            a_n = base + i
            b_n = base + (i + 1) % nodes_per_graph
            srcs += [a_n, b_n]
            dsts += [b_n, a_n]
    edge_index = jnp.array([srcs, dsts], dtype=jnp.int32)        # [2, E]

    # batch assignment vector
    batch = jnp.repeat(jnp.arange(G, dtype=jnp.int32), nodes_per_graph)   # [N]

    # deterministic parameters (GCNConv weights + biases, fc layer)
    w1 = glorot(k1, (IN_C, HID_C))
    b1 = jnp.zeros((1, HID_C), jnp.float32)
    w2 = glorot(k2, (HID_C, OUT_C))
    b2 = jnp.zeros((1, OUT_C), jnp.float32)
    wfc = glorot(k3, (OUT_C, 1))
    bfc = jax.random.uniform(k4, (1, 1), jnp.float32, -1.0, 1.0)

    # preprocessing (glue)
    a_hat = build_normalized_adjacency(edge_index, N)     # [N, N]
    pool_mat = build_pool_matrix(batch, G)                # [G, N]

    # run the fused Pallas kernel
    out = gnn_forward(a_hat, x, w1, b1, w2, b2, pool_mat, wfc, bfc)
    out = jax.block_until_ready(out)

    # pure-JAX f32 reference check (kernel uses bf16 MXU inputs -> relaxed tol)
    h1 = jnp.maximum(a_hat @ (x @ w1) + b1, 0.0)
    h2 = jnp.maximum(a_hat @ (h1 @ w2) + b2, 0.0)
    ref = (pool_mat @ h2) @ wfc + bfc
    assert out.shape == (G, 1)
    assert jnp.allclose(out, ref, atol=5e-2, rtol=5e-2), (out, ref)

    print("KERNEL_OK")
</pallas_src>

<mosaic_0001>
module attributes {stable_mosaic.version = 11 : i64} {
  func.func @gnn_kernel(%arg0: memref<128x128xbf16, #tpu.memory_space<vmem>>, %arg1: memref<128x128xbf16, #tpu.memory_space<vmem>>, %arg2: memref<3x128x128xbf16, #tpu.memory_space<vmem>>, %arg3: memref<2x128xf32, #tpu.memory_space<vmem>>, %arg4: memref<8x128xbf16, #tpu.memory_space<vmem>>, %arg5: memref<1x1xf32, #tpu.memory_space<smem>>, %arg6: memref<8x128xf32, #tpu.memory_space<vmem>>) attributes {dimension_semantics = [], scalar_prefetch = 0 : i64, scratch_operands = 0 : i64, tpu.core_type = #tpu.core_type<tc>} {
    %c0 = arith.constant 0 : index
    %c0_0 = arith.constant 0 : index
    %0 = vector.load %arg0[%c0, %c0_0] : memref<128x128xbf16, #tpu.memory_space<vmem>>, vector<128x128xbf16>
    %c0_1 = arith.constant 0 : index
    %c0_2 = arith.constant 0 : index
    %1 = vector.load %arg3[%c0_1, %c0_2] : memref<2x128xf32, #tpu.memory_space<vmem>>, vector<2x128xf32>
    %c0_3 = arith.constant 0 : index
    %c0_4 = arith.constant 0 : index
    %2 = vector.load %arg1[%c0_3, %c0_4] : memref<128x128xbf16, #tpu.memory_space<vmem>>, vector<128x128xbf16>
    %cst = arith.constant dense<0.000000e+00> : vector<128x128xf32>
    %3 = tpu.matmul %0, %2, %cst {dimension_numbers = #tpu.dot_dimension_numbers<[1], [0], [0], [1], [0, 0, 1, 1], [], []>} : vector<128x128xbf16>, vector<128x128xbf16>, vector<128x128xf32> -> vector<128x128xf32>
    %4 = arith.truncf %3 : vector<128x128xf32> to vector<128x128xbf16>
    %c0_5 = arith.constant 0 : index
    %c0_6 = arith.constant 0 : index
    %c0_7 = arith.constant 0 : index
    %5 = vector.load %arg2[%c0_5, %c0_6, %c0_7] : memref<3x128x128xbf16, #tpu.memory_space<vmem>>, vector<1x128x128xbf16>
    %6 = vector.shape_cast %5 : vector<1x128x128xbf16> to vector<128x128xbf16>
    %cst_8 = arith.constant dense<0.000000e+00> : vector<128x128xf32>
    %7 = tpu.matmul %4, %6, %cst_8 {dimension_numbers = #tpu.dot_dimension_numbers<[1], [0], [0], [1], [0, 0, 1, 1], [], []>} : vector<128x128xbf16>, vector<128x128xbf16>, vector<128x128xf32> -> vector<128x128xf32>
    %8 = vector.extract_strided_slice %1 {offsets = [0, 0], sizes = [1, 128], strides = [1, 1]} : vector<2x128xf32> to vector<1x128xf32>
    %9 = vector.broadcast %8 : vector<1x128xf32> to vector<128x128xf32>
    %10 = arith.addf %7, %9 : vector<128x128xf32>
    %cst_9 = arith.constant 0.000000e+00 : f32
    %11 = vector.broadcast %cst_9 : f32 to vector<128x128xf32>
    %12 = arith.maximumf %10, %11 : vector<128x128xf32>
    %13 = arith.truncf %12 : vector<128x128xf32> to vector<128x128xbf16>
    %c1 = arith.constant 1 : index
    %c0_10 = arith.constant 0 : index
    %c0_11 = arith.constant 0 : index
    %14 = vector.load %arg2[%c1, %c0_10, %c0_11] : memref<3x128x128xbf16, #tpu.memory_space<vmem>>, vector<1x128x128xbf16>
    %15 = vector.shape_cast %14 : vector<1x128x128xbf16> to vector<128x128xbf16>
    %cst_12 = arith.constant dense<0.000000e+00> : vector<128x128xf32>
    %16 = tpu.matmul %13, %15, %cst_12 {dimension_numbers = #tpu.dot_dimension_numbers<[1], [0], [0], [1], [0, 0, 1, 1], [], []>} : vector<128x128xbf16>, vector<128x128xbf16>, vector<128x128xf32> -> vector<128x128xf32>
    %17 = arith.truncf %16 : vector<128x128xf32> to vector<128x128xbf16>
    %cst_13 = arith.constant dense<0.000000e+00> : vector<128x128xf32>
    %18 = tpu.matmul %0, %17, %cst_13 {dimension_numbers = #tpu.dot_dimension_numbers<[1], [0], [0], [1], [0, 0, 1, 1], [], []>} : vector<128x128xbf16>, vector<128x128xbf16>, vector<128x128xf32> -> vector<128x128xf32>
    %19 = vector.extract_strided_slice %1 {offsets = [1, 0], sizes = [1, 128], strides = [1, 1]} : vector<2x128xf32> to vector<1x128xf32>
    %20 = vector.broadcast %19 : vector<1x128xf32> to vector<128x128xf32>
    %21 = arith.addf %18, %20 : vector<128x128xf32>
    %cst_14 = arith.constant 0.000000e+00 : f32
    %22 = vector.broadcast %cst_14 : f32 to vector<128x128xf32>
    %23 = arith.maximumf %21, %22 : vector<128x128xf32>
    %c0_15 = arith.constant 0 : index
    %c0_16 = arith.constant 0 : index
    %24 = vector.load %arg4[%c0_15, %c0_16] : memref<8x128xbf16, #tpu.memory_space<vmem>>, vector<8x128xbf16>
    %25 = arith.truncf %23 : vector<128x128xf32> to vector<128x128xbf16>
    %cst_17 = arith.constant dense<0.000000e+00> : vector<8x128xf32>
    %26 = tpu.matmul %24, %25, %cst_17 {dimension_numbers = #tpu.dot_dimension_numbers<[1], [0], [0], [1], [0, 0, 1, 1], [], []>} : vector<8x128xbf16>, vector<128x128xbf16>, vector<8x128xf32> -> vector<8x128xf32>
    %27 = arith.truncf %26 : vector<8x128xf32> to vector<8x128xbf16>
    %c2 = arith.constant 2 : index
    %c0_18 = arith.constant 0 : index
    %c0_19 = arith.constant 0 : index
    %28 = vector.load %arg2[%c2, %c0_18, %c0_19] : memref<3x128x128xbf16, #tpu.memory_space<vmem>>, vector<1x128x128xbf16>
    %29 = vector.shape_cast %28 : vector<1x128x128xbf16> to vector<128x128xbf16>
    %cst_20 = arith.constant dense<0.000000e+00> : vector<8x128xf32>
    %30 = tpu.matmul %27, %29, %cst_20 {dimension_numbers = #tpu.dot_dimension_numbers<[1], [0], [0], [1], [0, 0, 1, 1], [], []>} : vector<8x128xbf16>, vector<128x128xbf16>, vector<8x128xf32> -> vector<8x128xf32>
    %c0_21 = arith.constant 0 : index
    %c0_22 = arith.constant 0 : index
    %31 = memref.load %arg5[%c0_21, %c0_22] : memref<1x1xf32, #tpu.memory_space<smem>>
    %32 = vector.broadcast %31 : f32 to vector<8x128xf32>
    %33 = arith.addf %30, %32 : vector<8x128xf32>
    %c0_23 = arith.constant 0 : index
    %c0_24 = arith.constant 0 : index
    %34 = vector.load %arg6[%c0_23, %c0_24] : memref<8x128xf32, #tpu.memory_space<vmem>>, vector<8x128xf32>
    tpu.vector_store %arg6[%c0_23, %c0_24], %33 {strides = array<i32>} : memref<8x128xf32, #tpu.memory_space<vmem>>, vector<8x128xf32>,
    return
  }
}

</mosaic_0001>

<llo_original>
// kernel: tpu_custom_call.1
$region0: #{tpu_custom_call.1}
  #allocation0 [shape = 'u32[]', space=smem, size = 0x4, offset = 0x4, fixed_abs, tag = 'smem constant byte address 0x4 - core index']
  #allocation1 [shape = 'u32[144,128]{1,0:T(1,128)}', space=vmem, size = 0x12000, scoped, tag = 'internal scratch']
  #allocation2 [shape = 'f32[1,1]{1,0:T(1,128)S(6)}', space=smem, size = 0x200, scoped, tag = 'scoped memory for tpu_custom_call.1']
  %s0 = inlined_call_operand.hbm [shape: bf16[128,128], index: 0, kind: input, shape index: {}]
  %s1 = inlined_call_operand.hbm [shape: bf16[128,128], index: 1, kind: input, shape index: {}]
  %s2 = inlined_call_operand.hbm [shape: bf16[3,128,128], index: 2, kind: input, shape index: {}]
  %s3 = inlined_call_operand.vmem [shape: f32[2,128], index: 3, kind: input, shape index: {}]
  %s4 = inlined_call_operand.vmem [shape: bf16[8,128], index: 4, kind: input, shape index: {}]
  %s5 = inlined_call_operand.<no memory space> [shape: f32[1,1], index: 5, kind: input, shape index: {}]
  %s6 = inlined_call_operand.hbm [shape: f32[8,128], index: 6, kind: output, shape index: {}]
  %s7 = sld [smem:[#allocation0]]
  $region46: #{tpu_custom_call.1} parent=0
    _
  %s9 = ssub.s32 1, %s7
  %s10 = scalar_select 0, %s9, %s7
  %11 = sst [smem:[#allocation2]] %s5
  $region1: #{tpu_custom_call.1} parent=0
    #allocation3 [shape = 'u8[32768]{0}', space=vmem, size = 0x8000, scoped, tag = 'input window, operand 0, single buffered']
    #allocation4 [shape = 's32[1]{0}', space=sflag, size = 0x4, scoped, tag = 'scoped memory for tpu_custom_call.1']
    #allocation5 [shape = 's32[1]{0}', space=sflag, size = 0x4, scoped, tag = 'scoped memory for tpu_custom_call.1']
    #allocation6 [shape = 'u8[32768]{0}', space=vmem, size = 0x8000, scoped, tag = 'input window, operand 1, single buffered']
    #allocation7 [shape = 's32[1]{0}', space=sflag, size = 0x4, scoped, tag = 'scoped memory for tpu_custom_call.1']
    #allocation8 [shape = 'u8[98304]{0}', space=vmem, size = 0x18000, scoped, tag = 'input window, operand 2, single buffered']
    #allocation9 [shape = 'u8[4096]{0}', space=vmem, size = 0x1000, scoped, tag = 'output window, operand 0, single buffered']
    %12 = vsyncpa [#allocation4], 0
    %13 = vsyncpa [#allocation7], 0
    %14 = vsyncpa [#allocation5], 0
    // Predicated region
    $region2: #{tpu_custom_call.1} parent=1 // pred_check
      _
    $region3: #{tpu_custom_call.1} parent=1 // pred_check_branch
      %16 = sbr.rel (0) target = $region5
    $region4: #{tpu_custom_call.1} parent=1 // pred_region
      %s18 = ssub.s32 1024, 1024
      %19 = vsyncadd [#allocation4], %s18
      %s20 = sshll.u32 [#allocation3], 4
      %s21 = int_to_ptr.vmem [resolvable:$true] %s20
      %26 = dma.hbm_to_vmem [thread:$0]  %s0, 1024, %s21, [#allocation4], 64, 64, 4
    $region5: #{tpu_custom_call.1} parent=1 // pred_fallthru
      _
    // Predicated region
    $region6: #{tpu_custom_call.1} parent=1 // pred_check
      _
    $region7: #{tpu_custom_call.1} parent=1 // pred_check_branch
      %28 = sbr.rel (0) target = $region9
    $region8: #{tpu_custom_call.1} parent=1 // pred_region
      %s30 = ssub.s32 1024, 1024
      %31 = vsyncadd [#allocation7], %s30
      %s32 = sshll.u32 [#allocation6], 4
      %s33 = int_to_ptr.vmem [resolvable:$true] %s32
      %38 = dma.hbm_to_vmem [thread:$0]  %s1, 1024, %s33, [#allocation7], 64, 64, 4
    $region9: #{tpu_custom_call.1} parent=1 // pred_fallthru
      _
    // Predicated region
    $region10: #{tpu_custom_call.1} parent=1 // pred_check
      _
    $region11: #{tpu_custom_call.1} parent=1 // pred_check_branch
      %40 = sbr.rel (0) target = $region13
    $region12: #{tpu_custom_call.1} parent=1 // pred_region
      %s42 = ssub.s32 3072, 3072
      %43 = vsyncadd [#allocation7], %s42
      %s44 = sshll.u32 [#allocation8], 4
      %s45 = int_to_ptr.vmem [resolvable:$true] %s44
      %50 = dma.hbm_to_vmem [thread:$0]  %s2, 3072, %s45, [#allocation7], 64, 64, 4
    $region13: #{tpu_custom_call.1} parent=1 // pred_fallthru
      _
    // Predicated region
    $region14: #{tpu_custom_call.1} parent=1 // pred_check
      _
    $region15: #{tpu_custom_call.1} parent=1 // pred_check_branch
      %52 = sbr.rel (0) target = $region17
    $region16: #{tpu_custom_call.1} parent=1 // pred_region
      _
    $region17: #{tpu_custom_call.1} parent=1 // pred_fallthru
      _
    // Predicated region
    $region18: #{tpu_custom_call.1} parent=1 // pred_check
      _
    $region19: #{tpu_custom_call.1} parent=1 // pred_check_branch
      %54 = sbr.rel (0) target = $region21
    $region20: #{tpu_custom_call.1} parent=1 // pred_region
      _
    $region21: #{tpu_custom_call.1} parent=1 // pred_fallthru
      _
    // Predicated region
    $region22: #{tpu_custom_call.1} parent=1 // pred_check
      _
    $region23: #{tpu_custom_call.1} parent=1 // pred_check_branch
      %56 = sbr.rel (0) target = $region25
    $region24: #{tpu_custom_call.1} parent=1 // pred_region
      _
    $region25: #{tpu_custom_call.1} parent=1 // pred_fallthru
      _
    // Predicated region
    $region26: #{tpu_custom_call.1} parent=1 // pred_check
      _
    $region27: #{tpu_custom_call.1} parent=1 // pred_check_branch
      %58 = sbr.rel (0) target = $region29
    $region28: #{tpu_custom_call.1} parent=1 // pred_region
      %59 = dma.done [#allocation4], 1024
    $region29: #{tpu_custom_call.1} parent=1 // pred_fallthru
      _
    // Predicated region
    $region30: #{tpu_custom_call.1} parent=1 // pred_check
      _
    $region31: #{tpu_custom_call.1} parent=1 // pred_check_branch
      %61 = sbr.rel (0) target = $region33
    $region32: #{tpu_custom_call.1} parent=1 // pred_region
      %62 = dma.done [#allocation7], 1024
    $region33: #{tpu_custom_call.1} parent=1 // pred_fallthru
      _
    // Predicated region
    $region34: #{tpu_custom_call.1} parent=1 // pred_check
      _
    $region35: #{tpu_custom_call.1} parent=1 // pred_check_branch
      %64 = sbr.rel (0) target = $region37
    $region36: #{tpu_custom_call.1} parent=1 // pred_region
      %65 = dma.done [#allocation7], 3072
    $region37: #{tpu_custom_call.1} parent=1 // pred_fallthru
      _
    %v67 = vld [vmem:[#allocation3] sm:$0xf]
    %v68 = vld [vmem:[#allocation3 + $0x4] sm:$0xf]
    %v69 = vld [vmem:[#allocation3 + $0x8] sm:$0xf]
    %v70 = vld [vmem:[#allocation3 + $0xc] sm:$0xf]
    %v71 = vld [vmem:[#allocation3 + $0x10] sm:$0xf]
    %v72 = vld [vmem:[#allocation3 + $0x14] sm:$0xf]
    %v73 = vld [vmem:[#allocation3 + $0x18] sm:$0xf]
    %v74 = vld [vmem:[#allocation3 + $0x1c] sm:$0xf]
    %v75 = vld [vmem:[#allocation3 + $0x20] sm:$0xf]
    %v76 = vld [vmem:[#allocation3 + $0x24] sm:$0xf]
    %v77 = vld [vmem:[#allocation3 + $0x28] sm:$0xf]
    %v78 = vld [vmem:[#allocation3 + $0x2c] sm:$0xf]
    %v79 = vld [vmem:[#allocation3 + $0x30] sm:$0xf]
    %v80 = vld [vmem:[#allocation3 + $0x34] sm:$0xf]
    %v81 = vld [vmem:[#allocation3 + $0x38] sm:$0xf]
    %v82 = vld [vmem:[#allocation3 + $0x3c] sm:$0xf]
    %v83 = vld [vmem:[%s3] sm:$0x3]
    %v84 = vld [vmem:[#allocation6] sm:$0xf]
    %v85 = vld [vmem:[#allocation6 + $0x4] sm:$0xf]
    %v86 = vld [vmem:[#allocation6 + $0x8] sm:$0xf]
    %v87 = vld [vmem:[#allocation6 + $0xc] sm:$0xf]
    %v88 = vld [vmem:[#allocation6 + $0x10] sm:$0xf]
    %v89 = vld [vmem:[#allocation6 + $0x14] sm:$0xf]
    %v90 = vld [vmem:[#allocation6 + $0x18] sm:$0xf]
    %v91 = vld [vmem:[#allocation6 + $0x1c] sm:$0xf]
    %v92 = vld [vmem:[#allocation6 + $0x20] sm:$0xf]
    %v93 = vld [vmem:[#allocation6 + $0x24] sm:$0xf]
    %v94 = vld [vmem:[#allocation6 + $0x28] sm:$0xf]
    %v95 = vld [vmem:[#allocation6 + $0x2c] sm:$0xf]
    %v96 = vld [vmem:[#allocation6 + $0x30] sm:$0xf]
    %v97 = vld [vmem:[#allocation6 + $0x34] sm:$0xf]
    %v98 = vld [vmem:[#allocation6 + $0x38] sm:$0xf]
    %v99 = vld [vmem:[#allocation6 + $0x3c] sm:$0xf]
    %v116 = vunpack.c.l.b16 %v67
    %v117 = vunpack.c.l.b16 %v68
    %v118 = vunpack.c.l.b16 %v69
    %v119 = vunpack.c.l.b16 %v70
    %v120 = vunpack.c.l.b16 %v71
    %v121 = vunpack.c.l.b16 %v72
    %v122 = vunpack.c.l.b16 %v73
    %v123 = vunpack.c.l.b16 %v74
    %v124 = vunpack.c.l.b16 %v75
    %v125 = vunpack.c.l.b16 %v76
    %v126 = vunpack.c.l.b16 %v77
    %v127 = vunpack.c.l.b16 %v78
    %v128 = vunpack.c.l.b16 %v79
    %v129 = vunpack.c.l.b16 %v80
    %v130 = vunpack.c.l.b16 %v81
    %v131 = vunpack.c.l.b16 %v82
    %v132 = vpack.c.b16 %v117, %v116
    %v133 = vpack.c.b16 %v119, %v118
    %v134 = vpack.c.b16 %v121, %v120
    %v135 = vpack.c.b16 %v123, %v122
    %v136 = vpack.c.b16 %v125, %v124
    %v137 = vpack.c.b16 %v127, %v126
    %v138 = vpack.c.b16 %v129, %v128
    %v139 = vpack.c.b16 %v131, %v130
    %v164 = vunpack.c.l.b16 %v84
    %v165 = vunpack.c.l.b16 %v85
    %v166 = vunpack.c.l.b16 %v86
    %v167 = vunpack.c.l.b16 %v87
    %v168 = vunpack.c.l.b16 %v88
    %v169 = vunpack.c.l.b16 %v89
    %v170 = vunpack.c.l.b16 %v90
    %v171 = vunpack.c.l.b16 %v91
    %v172 = vunpack.c.l.b16 %v92
    %v173 = vunpack.c.l.b16 %v93
    %v174 = vunpack.c.l.b16 %v94
    %v175 = vunpack.c.l.b16 %v95
    %v176 = vunpack.c.l.b16 %v96
    %v177 = vunpack.c.l.b16 %v97
    %v178 = vunpack.c.l.b16 %v98
    %v179 = vunpack.c.l.b16 %v99
    %v180 = vpack.c.b16 %v165, %v164
    %v181 = vpack.c.b16 %v167, %v166
    %v182 = vpack.c.b16 %v169, %v168
    %v183 = vpack.c.b16 %v171, %v170
    %v184 = vpack.c.b16 %v173, %v172
    %v185 = vpack.c.b16 %v175, %v174
    %v186 = vpack.c.b16 %v177, %v176
    %v187 = vpack.c.b16 %v179, %v178
    %196 = vmatprep.subr.bf16.mxu0 0
    %197 = vmatpush1.bf16.msra.mxu0 %v187
    %198 = vmatprep.subr.bf16.mxu0 0
    %199 = vmatpush1.bf16.msra.mxu0 %v186
    %200 = vmatprep.subr.bf16.mxu0 0
    %201 = vmatpush1.bf16.msra.mxu0 %v185
    %202 = vmatprep.subr.bf16.mxu0 0
    %203 = vmatpush1.bf16.msra.mxu0 %v184
    %204 = vmatprep.subr.bf16.mxu0 0
    %205 = vmatpush1.bf16.msra.mxu0 %v183
    %206 = vmatprep.subr.bf16.mxu0 0
    %207 = vmatpush1.bf16.msra.mxu0 %v182
    %208 = vmatprep.subr.bf16.mxu0 0
    %209 = vmatpush1.bf16.msra.mxu0 %v181
    %210 = vmatprep.subr.bf16.mxu0 0
    %211 = vmatpush1.bf16.msra.mxu0 %v180
    %212 = vmatprep.subr.bf16.mxu0 0
    %213 = vmatpush2.bf16.msra.mxu0 0
    %214 = vmatprep.subr.bf16.mxu0 0
    %215 = vmatpush2.bf16.msra.mxu0 0
    %216 = vmatprep.subr.bf16.mxu0 0
    %217 = vmatpush2.bf16.msra.mxu0 0
    %218 = vmatprep.subr.bf16.mxu0 0
    %219 = vmatpush2.bf16.msra.mxu0 0
    %220 = vmatprep.subr.bf16.mxu0 0
    %221 = vmatpush2.bf16.msra.mxu0 0
    %222 = vmatprep.subr.bf16.mxu0 0
    %223 = vmatpush2.bf16.msra.mxu0 0
    %224 = vmatprep.subr.bf16.mxu0 0
    %225 = vmatpush2.bf16.msra.mxu0 0
    %226 = vmatprep.subr.bf16.mxu0 0
    %227 = vmatpush2.bf16.msra.mxu0 0
    %228 = vmatprep.mubr.bf16.mxu0 0
    %229 = vmatmul.mubr.bf16.gmra.mxu0 %v132
    %v230 = vpop.f32.mrf.mxu0
    %v231 = vadd.f32 0.0, %v230
    %v232 = vpop.f32.mrf.mxu0
    %v233 = vpop.f32.mrf.mxu0
    %v234 = vadd.f32 0.0, %v233
    %v235 = vpop.f32.mrf.mxu0
    %236 = vmatprep.mubr.bf16.mxu0 0
    %237 = vmatmul.mubr.bf16.gmra.mxu0 %v133
    %v238 = vpop.f32.mrf.mxu0
    %v239 = vadd.f32 0.0, %v238
    %v240 = vpop.f32.mrf.mxu0
    %v241 = vpop.f32.mrf.mxu0
    %v242 = vadd.f32 0.0, %v241
    %v243 = vpop.f32.mrf.mxu0
    %244 = vmatprep.mubr.bf16.mxu0 0
    %245 = vmatmul.mubr.bf16.gmra.mxu0 %v134
    %v246 = vpop.f32.mrf.mxu0
    %v247 = vadd.f32 0.0, %v246
    %v248 = vpop.f32.mrf.mxu0
    %v249 = vpop.f32.mrf.mxu0
    %v250 = vadd.f32 0.0, %v249
    %v251 = vpop.f32.mrf.mxu0
    %252 = vmatprep.mubr.bf16.mxu0 0
    %253 = vmatmul.mubr.bf16.gmra.mxu0 %v135
    %v254 = vpop.f32.mrf.mxu0
    %v255 = vadd.f32 0.0, %v254
    %v256 = vpop.f32.mrf.mxu0
    %v257 = vpop.f32.mrf.mxu0
    %v258 = vadd.f32 0.0, %v257
    %v259 = vpop.f32.mrf.mxu0
    %260 = vmatprep.mubr.bf16.mxu0 0
    %261 = vmatmul.mubr.bf16.gmra.mxu0 %v136
    %v262 = vpop.f32.mrf.mxu0
    %v263 = vadd.f32 0.0, %v262
    %v264 = vpop.f32.mrf.mxu0
    %v265 = vpop.f32.mrf.mxu0
    %v266 = vadd.f32 0.0, %v265
    %v267 = vpop.f32.mrf.mxu0
    %268 = vmatprep.mubr.bf16.mxu0 0
    %269 = vmatmul.mubr.bf16.gmra.mxu0 %v137
    %v270 = vpop.f32.mrf.mxu0
    %v271 = vadd.f32 0.0, %v270
    %v272 = vpop.f32.mrf.mxu0
    %v273 = vpop.f32.mrf.mxu0
    %v274 = vadd.f32 0.0, %v273
    %v275 = vpop.f32.mrf.mxu0
    %276 = vmatprep.mubr.bf16.mxu0 0
    %277 = vmatmul.mubr.bf16.gmra.mxu0 %v138
    %v278 = vpop.f32.mrf.mxu0
    %v279 = vadd.f32 0.0, %v278
    %v280 = vpop.f32.mrf.mxu0
    %v281 = vpop.f32.mrf.mxu0
    %v282 = vadd.f32 0.0, %v281
    %v283 = vpop.f32.mrf.mxu0
    %284 = vmatprep.mubr.bf16.mxu0 0
    %285 = vmatmul.mubr.bf16.gmra.mxu0 %v139
    %v286 = vpop.f32.mrf.mxu0
    %v287 = vadd.f32 0.0, %v286
    %v288 = vpop.f32.mrf.mxu0
    %v289 = vpop.f32.mrf.mxu0
    %v290 = vadd.f32 0.0, %v289
    %v291 = vpop.f32.mrf.mxu0
    %292 = vdwg.mxu0
    %v293 = vpack.c.bf16 %v234, %v231
    %v294 = vpack.c.bf16 %v242, %v239
    %v295 = vpack.c.bf16 %v250, %v247
    %v296 = vpack.c.bf16 %v258, %v255
    %v297 = vpack.c.bf16 %v266, %v263
    %v298 = vpack.c.bf16 %v274, %v271
    %v299 = vpack.c.bf16 %v282, %v279
    %v300 = vpack.c.bf16 %v290, %v287
    %v301 = vld [vmem:[#allocation8] sm:$0xf]
    %v302 = vld [vmem:[#allocation8 + $0x4] sm:$0xf]
    %v303 = vld [vmem:[#allocation8 + $0x8] sm:$0xf]
    %v304 = vld [vmem:[#allocation8 + $0xc] sm:$0xf]
    %v305 = vld [vmem:[#allocation8 + $0x10] sm:$0xf]
    %v306 = vld [vmem:[#allocation8 + $0x14] sm:$0xf]
    %v307 = vld [vmem:[#allocation8 + $0x18] sm:$0xf]
    %v308 = vld [vmem:[#allocation8 + $0x1c] sm:$0xf]
    %v309 = vld [vmem:[#allocation8 + $0x20] sm:$0xf]
    %v310 = vld [vmem:[#allocation8 + $0x24] sm:$0xf]
    %v311 = vld [vmem:[#allocation8 + $0x28] sm:$0xf]
    %v312 = vld [vmem:[#allocation8 + $0x2c] sm:$0xf]
    %v313 = vld [vmem:[#allocation8 + $0x30] sm:$0xf]
    %v314 = vld [vmem:[#allocation8 + $0x34] sm:$0xf]
    %v315 = vld [vmem:[#allocation8 + $0x38] sm:$0xf]
    %v316 = vld [vmem:[#allocation8 + $0x3c] sm:$0xf]
    %v317 = vlaneseq
    %v318 = vshrl.u32 %v317, 7
    %v319 = vsub.s32 0, %v318
    %v320 = vrot.slane %v83, %v319
    %v337 = vunpack.c.l.b16 %v301
    %v338 = vunpack.c.l.b16 %v302
    %v339 = vunpack.c.l.b16 %v303
    %v340 = vunpack.c.l.b16 %v304
    %v341 = vunpack.c.l.b16 %v305
    %v342 = vunpack.c.l.b16 %v306
    %v343 = vunpack.c.l.b16 %v307
    %v344 = vunpack.c.l.b16 %v308
    %v345 = vunpack.c.l.b16 %v309
    %v346 = vunpack.c.l.b16 %v310
    %v347 = vunpack.c.l.b16 %v311
    %v348 = vunpack.c.l.b16 %v312
    %v349 = vunpack.c.l.b16 %v313
    %v350 = vunpack.c.l.b16 %v314
    %v351 = vunpack.c.l.b16 %v315
    %v352 = vunpack.c.l.b16 %v316
    %v353 = vpack.c.b16 %v338, %v337
    %v354 = vpack.c.b16 %v340, %v339
    %v355 = vpack.c.b16 %v342, %v341
    %v356 = vpack.c.b16 %v344, %v343
    %v357 = vpack.c.b16 %v346, %v345
    %v358 = vpack.c.b16 %v348, %v347
    %v359 = vpack.c.b16 %v350, %v349
    %v360 = vpack.c.b16 %v352, %v351
    %369 = vmatprep.subr.bf16.mxu0 0
    %370 = vmatpush1.bf16.msra.mxu0 %v360
    %371 = vmatprep.subr.bf16.mxu0 0
    %372 = vmatpush1.bf16.msra.mxu0 %v359
    %373 = vmatprep.subr.bf16.mxu0 0
    %374 = vmatpush1.bf16.msra.mxu0 %v358
    %375 = vmatprep.subr.bf16.mxu0 0
    %376 = vmatpush1.bf16.msra.mxu0 %v357
    %377 = vmatprep.subr.bf16.mxu0 0
    %378 = vmatpush1.bf16.msra.mxu0 %v356
    %379 = vmatprep.subr.bf16.mxu0 0
    %380 = vmatpush1.bf16.msra.mxu0 %v355
    %381 = vmatprep.subr.bf16.mxu0 0
    %382 = vmatpush1.bf16.msra.mxu0 %v354
    %383 = vmatprep.subr.bf16.mxu0 0
    %384 = vmatpush1.bf16.msra.mxu0 %v353
    %385 = vmatprep.subr.bf16.mxu0 0
    %386 = vmatpush2.bf16.msra.mxu0 0
    %387 = vmatprep.subr.bf16.mxu0 0
    %388 = vmatpush2.bf16.msra.mxu0 0
    %389 = vmatprep.subr.bf16.mxu0 0
    %390 = vmatpush2.bf16.msra.mxu0 0
    %391 = vmatprep.subr.bf16.mxu0 0
    %392 = vmatpush2.bf16.msra.mxu0 0
    %393 = vmatprep.subr.bf16.mxu0 0
    %394 = vmatpush2.bf16.msra.mxu0 0
    %395 = vmatprep.subr.bf16.mxu0 0
    %396 = vmatpush2.bf16.msra.mxu0 0
    %397 = vmatprep.subr.bf16.mxu0 0
    %398 = vmatpush2.bf16.msra.mxu0 0
    %399 = vmatprep.subr.bf16.mxu0 0
    %400 = vmatpush2.bf16.msra.mxu0 0
    %401 = vmatprep.mubr.bf16.mxu0 0
    %402 = vmatmul.mubr.bf16.gmra.mxu0 %v293
    %v403 = vpop.f32.mrf.mxu0
    %v404 = vadd.f32 %v320, %v403
    %v405 = vpop.f32.mrf.mxu0
    %v406 = vpop.f32.mrf.mxu0
    %v407 = vadd.f32 %v320, %v406
    %v408 = vpop.f32.mrf.mxu0
    %409 = vmatprep.mubr.bf16.mxu0 0
    %410 = vmatmul.mubr.bf16.gmra.mxu0 %v294
    %v411 = vpop.f32.mrf.mxu0
    %v412 = vadd.f32 %v320, %v411
    %v413 = vpop.f32.mrf.mxu0
    %v414 = vpop.f32.mrf.mxu0
    %v415 = vadd.f32 %v320, %v414
    %v416 = vpop.f32.mrf.mxu0
    %417 = vmatprep.mubr.bf16.mxu0 0
    %418 = vmatmul.mubr.bf16.gmra.mxu0 %v295
    %v419 = vpop.f32.mrf.mxu0
    %v420 = vadd.f32 %v320, %v419
    %v421 = vpop.f32.mrf.mxu0
    %v422 = vpop.f32.mrf.mxu0
    %v423 = vadd.f32 %v320, %v422
    %v424 = vpop.f32.mrf.mxu0
    %425 = vmatprep.mubr.bf16.mxu0 0
    %426 = vmatmul.mubr.bf16.gmra.mxu0 %v296
    %v427 = vpop.f32.mrf.mxu0
    %v428 = vadd.f32 %v320, %v427
    %v429 = vpop.f32.mrf.mxu0
    %v430 = vpop.f32.mrf.mxu0
    %v431 = vadd.f32 %v320, %v430
    %v432 = vpop.f32.mrf.mxu0
    %433 = vmatprep.mubr.bf16.mxu0 0
    %434 = vmatmul.mubr.bf16.gmra.mxu0 %v297
    %v435 = vpop.f32.mrf.mxu0
    %v436 = vadd.f32 %v320, %v435
    %v437 = vpop.f32.mrf.mxu0
    %v438 = vpop.f32.mrf.mxu0
    %v439 = vadd.f32 %v320, %v438
    %v440 = vpop.f32.mrf.mxu0
    %441 = vmatprep.mubr.bf16.mxu0 0
    %442 = vmatmul.mubr.bf16.gmra.mxu0 %v298
    %v443 = vpop.f32.mrf.mxu0
    %v444 = vadd.f32 %v320, %v443
    %v445 = vpop.f32.mrf.mxu0
    %v446 = vpop.f32.mrf.mxu0
    %v447 = vadd.f32 %v320, %v446
    %v448 = vpop.f32.mrf.mxu0
    %449 = vmatprep.mubr.bf16.mxu0 0
    %450 = vmatmul.mubr.bf16.gmra.mxu0 %v299
    %v451 = vpop.f32.mrf.mxu0
    %v452 = vadd.f32 %v320, %v451
    %v453 = vpop.f32.mrf.mxu0
    %v454 = vpop.f32.mrf.mxu0
    %v455 = vadd.f32 %v320, %v454
    %v456 = vpop.f32.mrf.mxu0
    %457 = vmatprep.mubr.bf16.mxu0 0
    %458 = vmatmul.mubr.bf16.gmra.mxu0 %v300
    %v459 = vpop.f32.mrf.mxu0
    %v460 = vadd.f32 %v320, %v459
    %v461 = vpop.f32.mrf.mxu0
    %v462 = vpop.f32.mrf.mxu0
    %v463 = vadd.f32 %v320, %v462
    %v464 = vpop.f32.mrf.mxu0
    %465 = vdwg.mxu0
    %v466 = vmax.f32 %v404, 0.0
    %v467 = vmax.f32 %v407, 0.0
    %v468 = vmax.f32 %v412, 0.0
    %v469 = vmax.f32 %v415, 0.0
    %v470 = vmax.f32 %v420, 0.0
    %v471 = vmax.f32 %v423, 0.0
    %v472 = vmax.f32 %v428, 0.0
    %v473 = vmax.f32 %v431, 0.0
    %v474 = vmax.f32 %v436, 0.0
    %v475 = vmax.f32 %v439, 0.0
    %v476 = vmax.f32 %v444, 0.0
    %v477 = vmax.f32 %v447, 0.0
    %v478 = vmax.f32 %v452, 0.0
    %v479 = vmax.f32 %v455, 0.0
    %v480 = vmax.f32 %v460, 0.0
    %v481 = vmax.f32 %v463, 0.0
    %v482 = vpack.c.bf16 %v467, %v466
    %v483 = vpack.c.bf16 %v469, %v468
    %v484 = vpack.c.bf16 %v471, %v470
    %v485 = vpack.c.bf16 %v473, %v472
    %v486 = vpack.c.bf16 %v475, %v474
    %v487 = vpack.c.bf16 %v477, %v476
    %v488 = vpack.c.bf16 %v479, %v478
    %v489 = vpack.c.bf16 %v481, %v480
    %s490 = scalar_lea.vmem [#allocation8], 64
    %v491 = vld [vmem:[%s490] sm:$0xf]
    %v492 = vld [vmem:[%s490 + $0x4] sm:$0xf]
    %v493 = vld [vmem:[%s490 + $0x8] sm:$0xf]
    %v494 = vld [vmem:[%s490 + $0xc] sm:$0xf]
    %v495 = vld [vmem:[%s490 + $0x10] sm:$0xf]
    %v496 = vld [vmem:[%s490 + $0x14] sm:$0xf]
    %v497 = vld [vmem:[%s490 + $0x18] sm:$0xf]
    %v498 = vld [vmem:[%s490 + $0x1c] sm:$0xf]
    %v499 = vld [vmem:[%s490 + $0x20] sm:$0xf]
    %v500 = vld [vmem:[%s490 + $0x24] sm:$0xf]
    %v501 = vld [vmem:[%s490 + $0x28] sm:$0xf]
    %v502 = vld [vmem:[%s490 + $0x2c] sm:$0xf]
    %v503 = vld [vmem:[%s490 + $0x30] sm:$0xf]
    %v504 = vld [vmem:[%s490 + $0x34] sm:$0xf]
    %v505 = vld [vmem:[%s490 + $0x38] sm:$0xf]
    %v506 = vld [vmem:[%s490 + $0x3c] sm:$0xf]
    %v523 = vunpack.c.l.b16 %v491
    %v524 = vunpack.c.l.b16 %v492
    %v525 = vunpack.c.l.b16 %v493
    %v526 = vunpack.c.l.b16 %v494
    %v527 = vunpack.c.l.b16 %v495
    %v528 = vunpack.c.l.b16 %v496
    %v529 = vunpack.c.l.b16 %v497
    %v530 = vunpack.c.l.b16 %v498
    %v531 = vunpack.c.l.b16 %v499
    %v532 = vunpack.c.l.b16 %v500
    %v533 = vunpack.c.l.b16 %v501
    %v534 = vunpack.c.l.b16 %v502
    %v535 = vunpack.c.l.b16 %v503
    %v536 = vunpack.c.l.b16 %v504
    %v537 = vunpack.c.l.b16 %v505
    %v538 = vunpack.c.l.b16 %v506
    %v539 = vpack.c.b16 %v524, %v523
    %v540 = vpack.c.b16 %v526, %v525
    %v541 = vpack.c.b16 %v528, %v527
    %v542 = vpack.c.b16 %v530, %v529
    %v543 = vpack.c.b16 %v532, %v531
    %v544 = vpack.c.b16 %v534, %v533
    %v545 = vpack.c.b16 %v536, %v535
    %v546 = vpack.c.b16 %v538, %v537
    %555 = vmatprep.subr.bf16.mxu0 0
    %556 = vmatpush1.bf16.msra.mxu0 %v546
    %557 = vmatprep.subr.bf16.mxu0 0
    %558 = vmatpush1.bf16.msra.mxu0 %v545
    %559 = vmatprep.subr.bf16.mxu0 0
    %560 = vmatpush1.bf16.msra.mxu0 %v544
    %561 = vmatprep.subr.bf16.mxu0 0
    %562 = vmatpush1.bf16.msra.mxu0 %v543
    %563 = vmatprep.subr.bf16.mxu0 0
    %564 = vmatpush1.bf16.msra.mxu0 %v542
    %565 = vmatprep.subr.bf16.mxu0 0
    %566 = vmatpush1.bf16.msra.mxu0 %v541
    %567 = vmatprep.subr.bf16.mxu0 0
    %568 = vmatpush1.bf16.msra.mxu0 %v540
    %569 = vmatprep.subr.bf16.mxu0 0
    %570 = vmatpush1.bf16.msra.mxu0 %v539
    %571 = vmatprep.subr.bf16.mxu0 0
    %572 = vmatpush2.bf16.msra.mxu0 0
    %573 = vmatprep.subr.bf16.mxu0 0
    %574 = vmatpush2.bf16.msra.mxu0 0
    %575 = vmatprep.subr.bf16.mxu0 0
    %576 = vmatpush2.bf16.msra.mxu0 0
    %577 = vmatprep.subr.bf16.mxu0 0
    %578 = vmatpush2.bf16.msra.mxu0 0
    %579 = vmatprep.subr.bf16.mxu0 0
    %580 = vmatpush2.bf16.msra.mxu0 0
    %581 = vmatprep.subr.bf16.mxu0 0
    %582 = vmatpush2.bf16.msra.mxu0 0
    %583 = vmatprep.subr.bf16.mxu0 0
    %584 = vmatpush2.bf16.msra.mxu0 0
    %585 = vmatprep.subr.bf16.mxu0 0
    %586 = vmatpush2.bf16.msra.mxu0 0
    %587 = vmatprep.mubr.bf16.mxu0 0
    %588 = vmatmul.mubr.bf16.gmra.mxu0 %v482
    %v589 = vpop.f32.mrf.mxu0
    %v590 = vadd.f32 0.0, %v589
    %v591 = vpop.f32.mrf.mxu0
    %v592 = vpop.f32.mrf.mxu0
    %v593 = vadd.f32 0.0, %v592
    %v594 = vpop.f32.mrf.mxu0
    %595 = vmatprep.mubr.bf16.mxu0 0
    %596 = vmatmul.mubr.bf16.gmra.mxu0 %v483
    %v597 = vpop.f32.mrf.mxu0
    %v598 = vadd.f32 0.0, %v597
    %v599 = vpop.f32.mrf.mxu0
    %v600 = vpop.f32.mrf.mxu0
    %v601 = vadd.f32 0.0, %v600
    %v602 = vpop.f32.mrf.mxu0
    %603 = vmatprep.mubr.bf16.mxu0 0
    %604 = vmatmul.mubr.bf16.gmra.mxu0 %v484
    %v605 = vpop.f32.mrf.mxu0
    %v606 = vadd.f32 0.0, %v605
    %v607 = vpop.f32.mrf.mxu0
    %v608 = vpop.f32.mrf.mxu0
    %v609 = vadd.f32 0.0, %v608
    %v610 = vpop.f32.mrf.mxu0
    %611 = vmatprep.mubr.bf16.mxu0 0
    %612 = vmatmul.mubr.bf16.gmra.mxu0 %v485
    %v613 = vpop.f32.mrf.mxu0
    %v614 = vadd.f32 0.0, %v613
    %v615 = vpop.f32.mrf.mxu0
    %v616 = vpop.f32.mrf.mxu0
    %v617 = vadd.f32 0.0, %v616
    %v618 = vpop.f32.mrf.mxu0
    %619 = vmatprep.mubr.bf16.mxu0 0
    %620 = vmatmul.mubr.bf16.gmra.mxu0 %v486
    %v621 = vpop.f32.mrf.mxu0
    %v622 = vadd.f32 0.0, %v621
    %v623 = vpop.f32.mrf.mxu0
    %v624 = vpop.f32.mrf.mxu0
    %v625 = vadd.f32 0.0, %v624
    %v626 = vpop.f32.mrf.mxu0
    %627 = vmatprep.mubr.bf16.mxu0 0
    %628 = vmatmul.mubr.bf16.gmra.mxu0 %v487
    %v629 = vpop.f32.mrf.mxu0
    %v630 = vadd.f32 0.0, %v629
    %v631 = vpop.f32.mrf.mxu0
    %v632 = vpop.f32.mrf.mxu0
    %v633 = vadd.f32 0.0, %v632
    %v634 = vpop.f32.mrf.mxu0
    %635 = vmatprep.mubr.bf16.mxu0 0
    %636 = vmatmul.mubr.bf16.gmra.mxu0 %v488
    %v637 = vpop.f32.mrf.mxu0
    %v638 = vadd.f32 0.0, %v637
    %v639 = vpop.f32.mrf.mxu0
    %v640 = vpop.f32.mrf.mxu0
    %v641 = vadd.f32 0.0, %v640
    %v642 = vpop.f32.mrf.mxu0
    %643 = vmatprep.mubr.bf16.mxu0 0
    %644 = vmatmul.mubr.bf16.gmra.mxu0 %v489
    %v645 = vpop.f32.mrf.mxu0
    %v646 = vadd.f32 0.0, %v645
    %v647 = vpop.f32.mrf.mxu0
    %v648 = vpop.f32.mrf.mxu0
    %v649 = vadd.f32 0.0, %v648
    %v650 = vpop.f32.mrf.mxu0
    %651 = vdwg.mxu0
    %v652 = vpack.c.bf16 %v593, %v590
    %v653 = vpack.c.bf16 %v601, %v598
    %v654 = vpack.c.bf16 %v609, %v606
    %v655 = vpack.c.bf16 %v617, %v614
    %v656 = vpack.c.bf16 %v625, %v622
    %v657 = vpack.c.bf16 %v633, %v630
    %v658 = vpack.c.bf16 %v641, %v638
    %v659 = vpack.c.bf16 %v649, %v646
    %v660 = vlaneseq
    %v661 = vshrl.u32 %v660, 7
    %v662 = vsub.s32 1, %v661
    %v663 = vrot.slane %v83, %v662
    %664 = vmatprep.subr.bf16.mxu0 0
    %665 = vmatpush1.bf16.msra.mxu0 %v659
    %666 = vmatprep.subr.bf16.mxu0 0
    %667 = vmatpush1.bf16.msra.mxu0 %v658
    %668 = vmatprep.subr.bf16.mxu0 0
    %669 = vmatpush1.bf16.msra.mxu0 %v657
    %670 = vmatprep.subr.bf16.mxu0 0
    %671 = vmatpush1.bf16.msra.mxu0 %v656
    %672 = vmatprep.subr.bf16.mxu0 0
    %673 = vmatpush1.bf16.msra.mxu0 %v655
    %674 = vmatprep.subr.bf16.mxu0 0
    %675 = vmatpush1.bf16.msra.mxu0 %v654
    %676 = vmatprep.subr.bf16.mxu0 0
    %677 = vmatpush1.bf16.msra.mxu0 %v653
    %678 = vmatprep.subr.bf16.mxu0 0
    %679 = vmatpush1.bf16.msra.mxu0 %v652
    %680 = vmatprep.subr.bf16.mxu0 0
    %681 = vmatpush2.bf16.msra.mxu0 0
    %682 = vmatprep.subr.bf16.mxu0 0
    %683 = vmatpush2.bf16.msra.mxu0 0
    %684 = vmatprep.subr.bf16.mxu0 0
    %685 = vmatpush2.bf16.msra.mxu0 0
    %686 = vmatprep.subr.bf16.mxu0 0
    %687 = vmatpush2.bf16.msra.mxu0 0
    %688 = vmatprep.subr.bf16.mxu0 0
    %689 = vmatpush2.bf16.msra.mxu0 0
    %690 = vmatprep.subr.bf16.mxu0 0
    %691 = vmatpush2.bf16.msra.mxu0 0
    %692 = vmatprep.subr.bf16.mxu0 0
    %693 = vmatpush2.bf16.msra.mxu0 0
    %694 = vmatprep.subr.bf16.mxu0 0
    %695 = vmatpush2.bf16.msra.mxu0 0
    %696 = vmatprep.mubr.bf16.mxu0 0
    %697 = vmatmul.mubr.bf16.gmra.mxu0 %v132
    %v698 = vpop.f32.mrf.mxu0
    %v699 = vadd.f32 %v663, %v698
    %v700 = vpop.f32.mrf.mxu0
    %v701 = vpop.f32.mrf.mxu0
    %v702 = vadd.f32 %v663, %v701
    %v703 = vpop.f32.mrf.mxu0
    %704 = vmatprep.mubr.bf16.mxu0 0
    %705 = vmatmul.mubr.bf16.gmra.mxu0 %v133
    %v706 = vpop.f32.mrf.mxu0
    %v707 = vadd.f32 %v663, %v706
    %v708 = vpop.f32.mrf.mxu0
    %v709 = vpop.f32.mrf.mxu0
    %v710 = vadd.f32 %v663, %v709
    %v711 = vpop.f32.mrf.mxu0
    %712 = vmatprep.mubr.bf16.mxu0 0
    %713 = vmatmul.mubr.bf16.gmra.mxu0 %v134
    %v714 = vpop.f32.mrf.mxu0
    %v715 = vadd.f32 %v663, %v714
    %v716 = vpop.f32.mrf.mxu0
    %v717 = vpop.f32.mrf.mxu0
    %v718 = vadd.f32 %v663, %v717
    %v719 = vpop.f32.mrf.mxu0
    %720 = vmatprep.mubr.bf16.mxu0 0
    %721 = vmatmul.mubr.bf16.gmra.mxu0 %v135
    %v722 = vpop.f32.mrf.mxu0
    %v723 = vadd.f32 %v663, %v722
    %v724 = vpop.f32.mrf.mxu0
    %v725 = vpop.f32.mrf.mxu0
    %v726 = vadd.f32 %v663, %v725
    %v727 = vpop.f32.mrf.mxu0
    %728 = vmatprep.mubr.bf16.mxu0 0
    %729 = vmatmul.mubr.bf16.gmra.mxu0 %v136
    %v730 = vpop.f32.mrf.mxu0
    %v731 = vadd.f32 %v663, %v730
    %v732 = vpop.f32.mrf.mxu0
    %v733 = vpop.f32.mrf.mxu0
    %v734 = vadd.f32 %v663, %v733
    %v735 = vpop.f32.mrf.mxu0
    %736 = vmatprep.mubr.bf16.mxu0 0
    %737 = vmatmul.mubr.bf16.gmra.mxu0 %v137
    %v738 = vpop.f32.mrf.mxu0
    %v739 = vadd.f32 %v663, %v738
    %v740 = vpop.f32.mrf.mxu0
    %v741 = vpop.f32.mrf.mxu0
    %v742 = vadd.f32 %v663, %v741
    %v743 = vpop.f32.mrf.mxu0
    %744 = vmatprep.mubr.bf16.mxu0 0
    %745 = vmatmul.mubr.bf16.gmra.mxu0 %v138
    %v746 = vpop.f32.mrf.mxu0
    %v747 = vadd.f32 %v663, %v746
    %v748 = vpop.f32.mrf.mxu0
    %v749 = vpop.f32.mrf.mxu0
    %v750 = vadd.f32 %v663, %v749
    %v751 = vpop.f32.mrf.mxu0
    %752 = vmatprep.mubr.bf16.mxu0 0
    %753 = vmatmul.mubr.bf16.gmra.mxu0 %v139
    %v754 = vpop.f32.mrf.mxu0
    %v755 = vadd.f32 %v663, %v754
    %v756 = vpop.f32.mrf.mxu0
    %v757 = vpop.f32.mrf.mxu0
    %v758 = vadd.f32 %v663, %v757
    %v759 = vpop.f32.mrf.mxu0
    %760 = vdwg.mxu0
    %v761 = vmax.f32 %v699, 0.0
    %v762 = vmax.f32 %v702, 0.0
    %v763 = vmax.f32 %v707, 0.0
    %v764 = vmax.f32 %v710, 0.0
    %v765 = vmax.f32 %v715, 0.0
    %v766 = vmax.f32 %v718, 0.0
    %v767 = vmax.f32 %v723, 0.0
    %v768 = vmax.f32 %v726, 0.0
    %v769 = vmax.f32 %v731, 0.0
    %v770 = vmax.f32 %v734, 0.0
    %v771 = vmax.f32 %v739, 0.0
    %v772 = vmax.f32 %v742, 0.0
    %v773 = vmax.f32 %v747, 0.0
    %v774 = vmax.f32 %v750, 0.0
    %v775 = vmax.f32 %v755, 0.0
    %v776 = vmax.f32 %v758, 0.0
    %v777 = vld [vmem:[%s4] sm:$0xf]
    %v778 = vpack.c.bf16 %v762, %v761
    %v779 = vpack.c.bf16 %v764, %v763
    %v780 = vpack.c.bf16 %v766, %v765
    %v781 = vpack.c.bf16 %v768, %v767
    %v782 = vpack.c.bf16 %v770, %v769
    %v783 = vpack.c.bf16 %v772, %v771
    %v784 = vpack.c.bf16 %v774, %v773
    %v785 = vpack.c.bf16 %v776, %v775
    %786 = vmatprep.subr.bf16.mxu0 0
    %787 = vmatpush1.bf16.msra.mxu0 %v785
    %788 = vmatprep.subr.bf16.mxu0 0
    %789 = vmatpush1.bf16.msra.mxu0 %v784
    %790 = vmatprep.subr.bf16.mxu0 0
    %791 = vmatpush1.bf16.msra.mxu0 %v783
    %792 = vmatprep.subr.bf16.mxu0 0
    %793 = vmatpush1.bf16.msra.mxu0 %v782
    %794 = vmatprep.subr.bf16.mxu0 0
    %795 = vmatpush1.bf16.msra.mxu0 %v781
    %796 = vmatprep.subr.bf16.mxu0 0
    %797 = vmatpush1.bf16.msra.mxu0 %v780
    %798 = vmatprep.subr.bf16.mxu0 0
    %799 = vmatpush1.bf16.msra.mxu0 %v779
    %800 = vmatprep.subr.bf16.mxu0 0
    %801 = vmatpush1.bf16.msra.mxu0 %v778
    %802 = vmatprep.subr.bf16.mxu0 0
    %803 = vmatpush2.bf16.msra.mxu0 0
    %804 = vmatprep.subr.bf16.mxu0 0
    %805 = vmatpush2.bf16.msra.mxu0 0
    %806 = vmatprep.subr.bf16.mxu0 0
    %807 = vmatpush2.bf16.msra.mxu0 0
    %808 = vmatprep.subr.bf16.mxu0 0
    %809 = vmatpush2.bf16.msra.mxu0 0
    %810 = vmatprep.subr.bf16.mxu0 0
    %811 = vmatpush2.bf16.msra.mxu0 0
    %812 = vmatprep.subr.bf16.mxu0 0
    %813 = vmatpush2.bf16.msra.mxu0 0
    %814 = vmatprep.subr.bf16.mxu0 0
    %815 = vmatpush2.bf16.msra.mxu0 0
    %816 = vmatprep.subr.bf16.mxu0 0
    %817 = vmatpush2.bf16.msra.mxu0 0
    %818 = vmatprep.mubr.bf16.mxu0 0
    %819 = vmatmul.mubr.bf16.gmra.mxu0 %v777
    %v820 = vpop.f32.mrf.mxu0
    %v821 = vadd.f32 0.0, %v820
    %v822 = vpop.f32.mrf.mxu0
    %v823 = vpop.f32.mrf.mxu0
    %v824 = vpop.f32.mrf.mxu0
    %825 = vdwg.mxu0
    %v826 = vpack.c.bf16 %v821, %v821
    %s827 = scalar_lea.vmem [#allocation8], 128
    %v828 = vld [vmem:[%s827] sm:$0xf]
    %v829 = vld [vmem:[%s827 + $0x4] sm:$0xf]
    %v830 = vld [vmem:[%s827 + $0x8] sm:$0xf]
    %v831 = vld [vmem:[%s827 + $0xc] sm:$0xf]
    %v832 = vld [vmem:[%s827 + $0x10] sm:$0xf]
    %v833 = vld [vmem:[%s827 + $0x14] sm:$0xf]
    %v834 = vld [vmem:[%s827 + $0x18] sm:$0xf]
    %v835 = vld [vmem:[%s827 + $0x1c] sm:$0xf]
    %v836 = vld [vmem:[%s827 + $0x20] sm:$0xf]
    %v837 = vld [vmem:[%s827 + $0x24] sm:$0xf]
    %v838 = vld [vmem:[%s827 + $0x28] sm:$0xf]
    %v839 = vld [vmem:[%s827 + $0x2c] sm:$0xf]
    %v840 = vld [vmem:[%s827 + $0x30] sm:$0xf]
    %v841 = vld [vmem:[%s827 + $0x34] sm:$0xf]
    %v842 = vld [vmem:[%s827 + $0x38] sm:$0xf]
    %v843 = vld [vmem:[%s827 + $0x3c] sm:$0xf]
    %s844 = sld [smem:[#allocation2]]
    %v845 = vstv %s844
    %v862 = vunpack.c.l.b16 %v828
    %v863 = vunpack.c.l.b16 %v829
    %v864 = vunpack.c.l.b16 %v830
    %v865 = vunpack.c.l.b16 %v831
    %v866 = vunpack.c.l.b16 %v832
    %v867 = vunpack.c.l.b16 %v833
    %v868 = vunpack.c.l.b16 %v834
    %v869 = vunpack.c.l.b16 %v835
    %v870 = vunpack.c.l.b16 %v836
    %v871 = vunpack.c.l.b16 %v837
    %v872 = vunpack.c.l.b16 %v838
    %v873 = vunpack.c.l.b16 %v839
    %v874 = vunpack.c.l.b16 %v840
    %v875 = vunpack.c.l.b16 %v841
    %v876 = vunpack.c.l.b16 %v842
    %v877 = vunpack.c.l.b16 %v843
    %v878 = vpack.c.b16 %v863, %v862
    %v879 = vpack.c.b16 %v865, %v864
    %v880 = vpack.c.b16 %v867, %v866
    %v881 = vpack.c.b16 %v869, %v868
    %v882 = vpack.c.b16 %v871, %v870
    %v883 = vpack.c.b16 %v873, %v872
    %v884 = vpack.c.b16 %v875, %v874
    %v885 = vpack.c.b16 %v877, %v876
    %894 = vmatprep.subr.bf16.mxu0 0
    %895 = vmatpush1.bf16.msra.mxu0 %v885
    %896 = vmatprep.subr.bf16.mxu0 0
    %897 = vmatpush1.bf16.msra.mxu0 %v884
    %898 = vmatprep.subr.bf16.mxu0 0
    %899 = vmatpush1.bf16.msra.mxu0 %v883
    %900 = vmatprep.subr.bf16.mxu0 0
    %901 = vmatpush1.bf16.msra.mxu0 %v882
    %902 = vmatprep.subr.bf16.mxu0 0
    %903 = vmatpush1.bf16.msra.mxu0 %v881
    %904 = vmatprep.subr.bf16.mxu0 0
    %905 = vmatpush1.bf16.msra.mxu0 %v880
    %906 = vmatprep.subr.bf16.mxu0 0
    %907 = vmatpush1.bf16.msra.mxu0 %v879
    %908 = vmatprep.subr.bf16.mxu0 0
    %909 = vmatpush1.bf16.msra.mxu0 %v878
    %910 = vmatprep.subr.bf16.mxu0 0
    %911 = vmatpush2.bf16.msra.mxu0 0
    %912 = vmatprep.subr.bf16.mxu0 0
    %913 = vmatpush2.bf16.msra.mxu0 0
    %914 = vmatprep.subr.bf16.mxu0 0
    %915 = vmatpush2.bf16.msra.mxu0 0
    %916 = vmatprep.subr.bf16.mxu0 0
    %917 = vmatpush2.bf16.msra.mxu0 0
    %918 = vmatprep.subr.bf16.mxu0 0
    %919 = vmatpush2.bf16.msra.mxu0 0
    %920 = vmatprep.subr.bf16.mxu0 0
    %921 = vmatpush2.bf16.msra.mxu0 0
    %922 = vmatprep.subr.bf16.mxu0 0
    %923 = vmatpush2.bf16.msra.mxu0 0
    %924 = vmatprep.subr.bf16.mxu0 0
    %925 = vmatpush2.bf16.msra.mxu0 0
    %926 = vmatprep.mubr.bf16.mxu0 0
    %927 = vmatmul.mubr.bf16.gmra.mxu0 %v826
    %v928 = vpop.f32.mrf.mxu0
    %v929 = vadd.f32 %v845, %v928
    %v930 = vpop.f32.mrf.mxu0
    %v931 = vpop.f32.mrf.mxu0
    %v932 = vpop.f32.mrf.mxu0
    %933 = vdwg.mxu0
    %934 = vst [vmem:[#allocation9] sm:$0xff] %v929
    // Predicated region
    $region38: #{tpu_custom_call.1} parent=1 // pred_check
      _
    $region39: #{tpu_custom_call.1} parent=1 // pred_check_branch
      %936 = sbr.rel (0) target = $region41
    $region40: #{tpu_custom_call.1} parent=1 // pred_region
      %s938 = ssub.s32 128, 128
      %939 = vsyncadd [#allocation5], %s938
      %s941 = sshll.u32 [#allocation9], 4
      %s942 = int_to_ptr.vmem [resolvable:$true] %s941
      %944 = dma.vmem_to_hbm [thread:$0]  %s942, 128, %s6, [#allocation5]
    $region41: #{tpu_custom_call.1} parent=1 // pred_fallthru
      _
    // Predicated region
    $region42: #{tpu_custom_call.1} parent=1 // pred_check
      _
    $region43: #{tpu_custom_call.1} parent=1 // pred_check_branch
      %946 = sbr.rel (0) target = $region45
    $region44: #{tpu_custom_call.1} parent=1 // pred_region
      %947 = dma.done [#allocation5], 128
    $region45: #{tpu_custom_call.1} parent=1 // pred_fallthru
      _
    %948 = vsyncpa [#allocation4], 1
    %949 = vsyncpa [#allocation7], 1
    %950 = vsyncpa [#allocation5], 1

</llo_original>
